<compile_context>
chip_gen: v5e
topology: v5e:2x2
jax: 0.10.0
libtpu: 0.0.40
codegen_flags: <defaults>
</compile_context>

<pallas_src>
import functools

import jax
import jax.numpy as jnp
from jax.experimental import pallas as pl
from jax.experimental.pallas import tpu as pltpu


# ----------------------------------------------------------------------------
# Kernel
# ----------------------------------------------------------------------------
def _se_scale_kernel(*refs, with_residual, apply_relu):
    """One (Bt, HWf, Cf) channels-last slab per grid step.

    pooled = mean over HWf (sublane axis), f32 accumulation
    h      = relu(pooled @ w1)      w1: (Cf, mid)   (already fold-tiled)
    s      = sigmoid(h @ w2)        w2: (mid, Cf)   (already fold-tiled)
    y      = x * s  [+ residual]  [relu]
    """
    if with_residual:
        x_ref, res_ref, w1_ref, w2_ref, o_ref = refs
    else:
        x_ref, w1_ref, w2_ref, o_ref = refs
        res_ref = None

    x = x_ref[...]                                      # (Bt, HWf, Cf)
    # Global average pool over HW: f32 accumulation fused into the reduce.
    pooled = jnp.mean(x, axis=1, dtype=jnp.float32)     # (Bt, Cf)

    w1 = w1_ref[...]                                    # (Cf, mid)
    w2 = w2_ref[...]                                    # (mid, Cf)

    # Tiny FC pair as real batched matmuls on the MXU. Weights stay in their
    # storage dtype (bf16-friendly path); accumulation in f32.
    h = jnp.dot(pooled.astype(w1.dtype), w1, preferred_element_type=jnp.float32)
    h = jnp.maximum(h, 0.0)                             # ReLU
    s = jnp.dot(h.astype(w2.dtype), w2, preferred_element_type=jnp.float32)
    s = jax.nn.sigmoid(s)                               # (Bt, Cf), f32

    # Single downcast of the small per-image scale; the big multiply runs in
    # the activation dtype with exactly one full-block cast at the store.
    y = x * s.astype(x.dtype)[:, None, :]
    if with_residual:
        y = y + res_ref[...].astype(y.dtype)
    if apply_relu:
        y = jnp.maximum(y, 0.0).astype(y.dtype)
    o_ref[...] = y.astype(o_ref.dtype)


# ----------------------------------------------------------------------------
# VMEM accounting / block-batch selection
# ----------------------------------------------------------------------------
def _round_up(x, m):
    return ((x + m - 1) // m) * m


def _sublane_multiple(dtype):
    # f32 -> 8, bf16 -> 16, int8/fp8 -> 32.
    return max(8, 32 // jnp.dtype(dtype).itemsize)


def _padded_tile_bytes(rows, cols, dtype):
    """Bytes of one (rows, cols) tile after Mosaic sublane/lane padding."""
    return (_round_up(int(rows), _sublane_multiple(dtype))
            * _round_up(int(cols), 128)
            * jnp.dtype(dtype).itemsize)


def _vmem_policy():
    """Generation-specific VMEM budgets and grid preferences."""
    kind = ""
    try:
        kind = jax.devices()[0].device_kind.lower()
    except Exception:
        pass
    if any(tag in kind for tag in ("v5 lite", "v5e", "v5lite", "v6e", "v6 lite")):
        # v5e / v6e: 128 MiB physical VMEM, single TensorCore -> big blocks,
        # no need to keep multiple grid steps.
        return dict(budget=80 << 20, cap=104 << 20,
                    want_multi_step=False, prefer_even_grid=False)
    # v7x (64 MiB VMEM, 2 TensorCores) and unknown chips: conservative budget,
    # keep >= 2 grid iterations (prefer an even count) so both cores get work.
    return dict(budget=24 << 20, cap=56 << 20,
                want_multi_step=True, prefer_even_grid=True)


def _pick_block_batch(B, bytes_per_image, budget, *, want_multi_step,
                      prefer_even_grid):
    """Largest divisor of B whose (padded, double-buffered) footprint fits."""
    max_bt = max(1, int(budget // max(1, bytes_per_image)))
    if want_multi_step and B >= 2:
        max_bt = min(max_bt, B // 2)
    max_bt = min(max_bt, B)
    divisors = [d for d in range(1, B + 1) if B % d == 0 and d <= max_bt]
    if not divisors:
        return 1
    best = max(divisors)
    if prefer_even_grid:
        even = [d for d in divisors if (B // d) % 2 == 0]
        if even and max(even) * 2 >= best:
            return max(even)
    return best


# ----------------------------------------------------------------------------
# NHWC entry point (primary)
# ----------------------------------------------------------------------------
def se_layer_nhwc(x, w1, w2, residual=None, *, apply_relu=None,
                  block_batch=None, vmem_budget_bytes=None,
                  alias_input=True, activation_buffers=None):
    """SE channel scale (+ optional fused residual add and ReLU), NHWC.

    x:        (B, H, W, C) channels-last activations
    w1:       (C//r, C)    first SE Linear weight (no bias)
    w2:       (C, C//r)    second SE Linear weight (no bias)
    residual: optional (B, H, W, C) shortcut to add before the final ReLU

    Note: with alias_input=True the output HBM buffer aliases the x slab; the
    caller must be able to donate that buffer, otherwise pass
    alias_input=False (XLA would insert a defensive copy otherwise).
    """
    B, H, W, C = x.shape
    HW = H * W
    mid = w1.shape[0]
    assert w1.shape == (mid, C) and w2.shape == (C, mid), "SE weight shapes"
    with_residual = residual is not None
    if apply_relu is None:
        apply_relu = with_residual

    # Lane folding for C < 128 stages: present a 128-wide (lane-dense) last
    # dim to the kernel so stores are unmasked vst.
    fold = 1
    if C < 128 and 128 % C == 0:
        f = 128 // C
        if HW % f == 0:
            fold = f
    hw_f = HW // fold
    c_f = C * fold

    x2 = x.reshape(B, hw_f, c_f)
    res2 = residual.reshape(B, hw_f, c_f) if with_residual else None

    # Pre-transpose (and fold-tile) the tiny FC weights in the wrapper so the
    # kernel does (Bt,Cf) @ (Cf,mid) @ (mid,Cf) with no in-kernel slicing.
    w1_mat = jnp.transpose(w1)                       # (C, mid)
    w2_mat = jnp.transpose(w2)                       # (mid, C)
    if fold > 1:
        w1_mat = jnp.concatenate([w1_mat] * fold, axis=0) / fold   # (Cf, mid)
        w2_mat = jnp.concatenate([w2_mat] * fold, axis=1)          # (mid, Cf)

    policy = _vmem_policy()
    budget = policy["budget"] if vmem_budget_bytes is None else vmem_budget_bytes

    # Padded footprint of one image's activation tile (last two dims padded).
    act_tile_bytes = _padded_tile_bytes(hw_f, c_f, x.dtype)
    n_big = 2 + (1 if with_residual else 0)          # x (+ residual) + output
    per_image = 2 * n_big * act_tile_bytes           # double-buffered blocks

    bt = block_batch if block_batch is not None else _pick_block_batch(
        B, per_image, budget,
        want_multi_step=policy["want_multi_step"],
        prefer_even_grid=policy["prefer_even_grid"])
    assert B % bt == 0, "block_batch must divide batch"
    grid = (B // bt,)

    w_bytes = (_padded_tile_bytes(w1_mat.shape[0], w1_mat.shape[1], w1_mat.dtype)
               + _padded_tile_bytes(w2_mat.shape[0], w2_mat.shape[1], w2_mat.dtype))
    vmem_needed = bt * per_image + 2 * w_bytes + (4 << 20)
    vmem_limit = int(min(max(vmem_needed, 32 << 20), policy["cap"]))

    def act_index_map(b):
        return (b, 0, 0)

    x_spec_kwargs = {}
    if activation_buffers is not None and int(activation_buffers) > 2:
        # Deeper input buffering for short grids (only where VMEM headroom
        # exists, e.g. v5e/v6e). Off by default.
        x_spec_kwargs = dict(pipeline_mode=pl.Buffered(int(activation_buffers)))

    in_specs = [pl.BlockSpec((bt, hw_f, c_f), act_index_map, **x_spec_kwargs)]
    inputs = [x2]
    if with_residual:
        in_specs.append(pl.BlockSpec((bt, hw_f, c_f), act_index_map))
        inputs.append(res2)
    in_specs += [
        pl.BlockSpec(w1_mat.shape, lambda b: (0, 0)),
        pl.BlockSpec(w2_mat.shape, lambda b: (0, 0)),
    ]
    inputs += [w1_mat, w2_mat]

    itemsize = jnp.dtype(x.dtype).itemsize
    act_bytes = B * HW * C * itemsize
    cost = pl.CostEstimate(
        flops=int(4 * B * C * mid
                  + (1 + (1 if with_residual else 0) + (1 if apply_relu else 0))
                  * B * HW * C
                  + B * HW * C),                      # pool reduce + scale mul
        transcendentals=int(B * C),                   # sigmoid
        bytes_accessed=int(n_big * act_bytes
                           + w1_mat.size * jnp.dtype(w1_mat.dtype).itemsize
                           + w2_mat.size * jnp.dtype(w2_mat.dtype).itemsize),
    )

    kernel = functools.partial(_se_scale_kernel,
                               with_residual=with_residual,
                               apply_relu=apply_relu)

    out = pl.pallas_call(
        kernel,
        out_shape=jax.ShapeDtypeStruct((B, hw_f, c_f), x.dtype),
        grid_spec=pltpu.PrefetchScalarGridSpec(
            num_scalar_prefetch=0,
            grid=grid,
            in_specs=in_specs,
            out_specs=pl.BlockSpec((bt, hw_f, c_f), act_index_map),
        ),
        compiler_params=pltpu.CompilerParams(
            dimension_semantics=("parallel",),
            vmem_limit_bytes=vmem_limit,
        ),
        cost_estimate=cost,
        input_output_aliases=({0: 0} if alias_input else {}),
    )(*inputs)

    return out.reshape(B, H, W, C)


# ----------------------------------------------------------------------------
# NCHW convenience wrapper (PyTorch layout) — demo plumbing only.
# ----------------------------------------------------------------------------
def se_block_scale_nchw(x_nchw, w1, w2, residual_nchw=None, **kwargs):
    # TODO(synk): in a production NHWC model call se_layer_nhwc directly; each
    # transpose here is a full extra HBM read+write of the activation.
    x_nhwc = jnp.transpose(x_nchw, (0, 2, 3, 1))
    res_nhwc = (jnp.transpose(residual_nchw, (0, 2, 3, 1))
                if residual_nchw is not None else None)
    out = se_layer_nhwc(x_nhwc, w1, w2, res_nhwc, **kwargs)
    return jnp.transpose(out, (0, 3, 1, 2))


# ----------------------------------------------------------------------------
# Pure-JAX reference (NCHW, matching PyTorch semantics)
# ----------------------------------------------------------------------------
def se_block_scale_ref(x, w1, w2, residual=None, apply_relu=None):
    if apply_relu is None:
        apply_relu = residual is not None
    xf = x.astype(jnp.float32)
    y = jnp.mean(xf, axis=(2, 3))                               # (B, C)
    y = jnp.maximum(y @ w1.T.astype(jnp.float32), 0.0)          # (B, C//r)
    y = jax.nn.sigmoid(y @ w2.T.astype(jnp.float32))            # (B, C)
    out = xf * y[:, :, None, None]
    if residual is not None:
        out = out + residual.astype(jnp.float32)
    if apply_relu:
        out = jnp.maximum(out, 0.0)
    return out.astype(x.dtype)


if __name__ == "__main__":
    key = jax.random.PRNGKey(0)
    k1, k2, k3, k4, k5, k6 = jax.random.split(key, 6)
    reduction = 16

    # Case 1: C < 128 stage (m_channels*2 = 64) -> exercises the lane-folding
    # path; SE scale only.
    B, C, H, W = 4, 64, 8, 8
    mid = C // reduction
    x = jax.random.normal(k1, (B, C, H, W), dtype=jnp.float32)
    w1 = jax.random.normal(k2, (mid, C), dtype=jnp.float32) * 0.1   # fc[0].weight
    w2 = jax.random.normal(k3, (C, mid), dtype=jnp.float32) * 0.1   # fc[2].weight

    out1 = jax.jit(se_block_scale_nchw)(x, w1, w2)
    out1 = jax.block_until_ready(out1)
    ref1 = se_block_scale_ref(x, w1, w2)
    assert out1.shape == (B, C, H, W)
    assert jnp.allclose(out1, ref1, atol=2e-3, rtol=2e-3), "case1 mismatch"

    # Case 2: lane-dense C = 128 stage with the fused residual add + ReLU
    # (the BasicBlock/Bottleneck block tail).
    B2, C2, H2, W2 = 4, 128, 8, 8
    mid2 = C2 // reduction
    x2 = jax.random.normal(k4, (B2, C2, H2, W2), dtype=jnp.float32)
    res = jax.random.normal(k5, (B2, C2, H2, W2), dtype=jnp.float32)
    w1b = jax.random.normal(k6, (mid2, C2), dtype=jnp.float32) * 0.1
    w2b = jax.random.normal(k2, (C2, mid2), dtype=jnp.float32) * 0.1

    out2 = jax.jit(se_block_scale_nchw)(x2, w1b, w2b, res)
    out2 = jax.block_until_ready(out2)
    ref2 = se_block_scale_ref(x2, w1b, w2b, res)
    assert out2.shape == (B2, C2, H2, W2)
    assert jnp.allclose(out2, ref2, atol=2e-3, rtol=2e-3), "case2 mismatch"

    print("KERNEL_OK")
</pallas_src>

<mosaic_0001>
module attributes {stable_mosaic.version = 11 : i64} {
  func.func @_se_scale_kernel(%arg0: i32, %arg1: memref<2x32x128xf32, #tpu.memory_space<vmem>>, %arg2: memref<128x4xf32, #tpu.memory_space<vmem>>, %arg3: memref<4x128xf32, #tpu.memory_space<vmem>>, %arg4: memref<2x32x128xf32, #tpu.memory_space<vmem>>) attributes {dimension_semantics = [#tpu.dimension_semantics<parallel>], iteration_bounds = array<i64: 2>, scalar_prefetch = 0 : i64, scratch_operands = 0 : i64, tpu.core_type = #tpu.core_type<tc>, window_params = [{transform_indices = @transform_0, window_bounds = array<i64: 2, 32, 128>}, {pipeline_mode = #tpu.pipeline_mode<synchronous>, transform_indices = @transform_1, window_bounds = array<i64: 128, 4>}, {pipeline_mode = #tpu.pipeline_mode<synchronous>, transform_indices = @transform_2, window_bounds = array<i64: 4, 128>}, {transform_indices = @transform_3, window_bounds = array<i64: 2, 32, 128>}]} {
    %c0 = arith.constant 0 : index
    %c0_0 = arith.constant 0 : index
    %c0_1 = arith.constant 0 : index
    %0 = vector.load %arg1[%c0, %c0_0, %c0_1] : memref<2x32x128xf32, #tpu.memory_space<vmem>>, vector<2x32x128xf32>
    %cst = arith.constant dense<0.000000e+00> : vector<2x128xf32>
    %1 = vector.multi_reduction <add>, %0, %cst [1] : vector<2x32x128xf32> to vector<2x128xf32>
    %cst_2 = arith.constant 3.200000e+01 : f32
    %2 = vector.broadcast %cst_2 : f32 to vector<2x128xf32>
    %3 = arith.divf %1, %2 : vector<2x128xf32>
    %c0_3 = arith.constant 0 : index
    %c0_4 = arith.constant 0 : index
    %4 = vector.load %arg2[%c0_3, %c0_4] : memref<128x4xf32, #tpu.memory_space<vmem>>, vector<128x4xf32>
    %c0_5 = arith.constant 0 : index
    %c0_6 = arith.constant 0 : index
    %5 = vector.load %arg3[%c0_5, %c0_6] : memref<4x128xf32, #tpu.memory_space<vmem>>, vector<4x128xf32>
    %cst_7 = arith.constant dense<0.000000e+00> : vector<2x4xf32>
    %6 = tpu.matmul %3, %4, %cst_7 {dimension_numbers = #tpu.dot_dimension_numbers<[1], [0], [0], [1], [0, 0, 1, 1], [], []>} : vector<2x128xf32>, vector<128x4xf32>, vector<2x4xf32> -> vector<2x4xf32>
    %cst_8 = arith.constant 0.000000e+00 : f32
    %7 = vector.broadcast %cst_8 : f32 to vector<2x4xf32>
    %8 = arith.maximumf %6, %7 : vector<2x4xf32>
    %cst_9 = arith.constant dense<0.000000e+00> : vector<2x128xf32>
    %9 = tpu.matmul %8, %5, %cst_9 {dimension_numbers = #tpu.dot_dimension_numbers<[1], [0], [0], [1], [0, 0, 1, 1], [], []>} : vector<2x4xf32>, vector<4x128xf32>, vector<2x128xf32> -> vector<2x128xf32>
    %10 = arith.negf %9 : vector<2x128xf32>
    %11 = math.exp %10 : vector<2x128xf32>
    %cst_10 = arith.constant 1.000000e+00 : f32
    %12 = vector.broadcast %cst_10 : f32 to vector<2x128xf32>
    %13 = arith.addf %12, %11 : vector<2x128xf32>
    %14 = arith.divf %12, %13 : vector<2x128xf32>
    %15 = vector.shape_cast %14 : vector<2x128xf32> to vector<2x1x128xf32>
    %16 = vector.broadcast %15 : vector<2x1x128xf32> to vector<2x32x128xf32>
    %17 = arith.mulf %0, %16 : vector<2x32x128xf32>
    %c0_11 = arith.constant 0 : index
    %c0_12 = arith.constant 0 : index
    %c0_13 = arith.constant 0 : index
    %18 = vector.load %arg4[%c0_11, %c0_12, %c0_13] : memref<2x32x128xf32, #tpu.memory_space<vmem>>, vector<2x32x128xf32>
    tpu.vector_store %arg4[%c0_11, %c0_12, %c0_13], %17 {strides = array<i32>} : memref<2x32x128xf32, #tpu.memory_space<vmem>>, vector<2x32x128xf32>,
    return
  }
  func.func @transform_0(%arg0: i32) -> (i32, i32, i32) {
    %c0_i32 = arith.constant 0 : i32
    %c0_i32_0 = arith.constant 0 : i32
    %c0_i32_1 = arith.constant 0 : i32
    return %arg0, %c0_i32, %c0_i32_0 : i32, i32, i32
  }
  func.func @transform_1(%arg0: i32) -> (i32, i32) {
    %c0_i32 = arith.constant 0 : i32
    %c0_i32_0 = arith.constant 0 : i32
    %c0_i32_1 = arith.constant 0 : i32
    return %c0_i32, %c0_i32_0 : i32, i32
  }
  func.func @transform_2(%arg0: i32) -> (i32, i32) {
    %c0_i32 = arith.constant 0 : i32
    %c0_i32_0 = arith.constant 0 : i32
    %c0_i32_1 = arith.constant 0 : i32
    return %c0_i32, %c0_i32_0 : i32, i32
  }
  func.func @transform_3(%arg0: i32) -> (i32, i32, i32) {
    %c0_i32 = arith.constant 0 : i32
    %c0_i32_0 = arith.constant 0 : i32
    %c0_i32_1 = arith.constant 0 : i32
    return %arg0, %c0_i32, %c0_i32_0 : i32, i32, i32
  }
}

</mosaic_0001>

<llo_original>
// kernel: se_block_scale_nchw.1
$region0: #{se_block_scale_nchw.1}
  #allocation0 [shape = 'u32[]', space=smem, size = 0x4, offset = 0x4, fixed_abs, tag = 'smem constant byte address 0x4 - core index']
  #allocation1 [shape = 'u32[72,128]{1,0:T(1,128)}', space=vmem, size = 0x9000, scoped, tag = 'internal scratch']
  %s0 = inlined_call_operand.vmem [shape: f32[4,32,128], index: 0, kind: input, shape index: {}, may-alias: {0,3}]
  %s1 = inlined_call_operand.vmem [shape: f32[128,4], index: 1, kind: input, shape index: {}]
  %s2 = inlined_call_operand.vmem [shape: f32[4,128], index: 2, kind: input, shape index: {}]
  %s3 = inlined_call_operand.vmem [shape: f32[4,32,128], index: 3, kind: output, shape index: {}, may-alias: {0,3}]
  %s4 = sld [smem:[#allocation0]]
  $region45: #{se_block_scale_nchw.1} parent=0
    _
  %s6 = ssub.s32 1, %s4
  %s7 = scalar_select 0, %s6, %s4
  loop: start=0, step=1, limit=4
  $region2: #{se_block_scale_nchw.1} parent=0 // loop_pre_header
    _
  $region3: #{se_block_scale_nchw.1} parent=0 // loop_header
    %s9 = sphi 0, %s13
    %p10 = scmp.ge.s32.totalorder %s9, 4
    %s19 = sphi 0, %s21
    %s22 = sphi 0, %s19
    %s23 = sphi 0, %s22
    %s39 = sphi 0, %s23
    %s43 = sphi 0, %s43
    %s45 = sphi 0, %s43
    %s46 = sphi 0, %s45
    %s60 = sphi 0, %s46
    %s64 = sphi 0, %s64
    %s66 = sphi 0, %s64
    %s67 = sphi 0, %s66
    %s81 = sphi 0, %s67
    %s87 = sphi 0, %s89
    %s90 = sphi 0, %s87
    %s91 = sphi 0, %s90
    %s107 = sphi 0, %s91
  $region4: #{se_block_scale_nchw.1} parent=0 // loop_header_branch
    %12 = sbr.rel (%p10) target = $region8
  $region5: #{se_block_scale_nchw.1} parent=0 // loop_body
    %s14 = ssub.s32 %s9, 1
    %s15 = ssub.s32 %s9, 2
    %s16 = sadd.s32 %s9, 1
    %s17 = ssub.s32 %s9, %s16
    %p18 = scmp.eq.s32.totalorder %s17, 0
    %s20 = sadd.s32 %s19, 1
    %s21 = scalar_select %p18, %s19, %s20
    %p24 = pneg %p18
    %p25 = scmp.eq.s32.totalorder %s9, 1
    %p26 = por %p24, %p25
    %p27 = scmp.ne.s32.totalorder %s19, %s22
    %p28 = scmp.eq.s32.totalorder %s9, 0
    %p29 = por %p27, %p28
    %p30 = scmp.ne.s32.totalorder %s19, %s22
    %p31 = scmp.eq.s32.totalorder %s14, 1
    %p32 = por %p30, %p31
    %p33 = scmp.ne.s32.totalorder %s22, %s23
    %p34 = scmp.eq.s32.totalorder %s14, 0
    %p35 = por %p33, %p34
    %p36 = scmp.ne.s32.totalorder %s22, %s23
    %p37 = scmp.eq.s32.totalorder %s15, 1
    %p38 = por %p36, %p37
    %p40 = scmp.ne.s32.totalorder %s23, %s39
    %p41 = scmp.eq.s32.totalorder %s15, 0
    %p42 = por %p40, %p41
    %s44 = sadd.s32 %s43, 1
    %p47 = scmp.eq.s32.totalorder %s9, 1
    %p48 = scmp.ne.s32.totalorder %s43, %s45
    %p49 = scmp.eq.s32.totalorder %s9, 0
    %p50 = por %p48, %p49
    %p51 = scmp.ne.s32.totalorder %s43, %s45
    %p52 = scmp.eq.s32.totalorder %s14, 1
    %p53 = por %p51, %p52
    %p54 = scmp.ne.s32.totalorder %s45, %s46
    %p55 = scmp.eq.s32.totalorder %s14, 0
    %p56 = por %p54, %p55
    %p57 = scmp.ne.s32.totalorder %s45, %s46
    %p58 = scmp.eq.s32.totalorder %s15, 1
    %p59 = por %p57, %p58
    %p61 = scmp.ne.s32.totalorder %s46, %s60
    %p62 = scmp.eq.s32.totalorder %s15, 0
    %p63 = por %p61, %p62
    %s65 = sadd.s32 %s64, 1
    %p68 = scmp.eq.s32.totalorder %s9, 1
    %p69 = scmp.ne.s32.totalorder %s64, %s66
    %p70 = scmp.eq.s32.totalorder %s9, 0
    %p71 = por %p69, %p70
    %p72 = scmp.ne.s32.totalorder %s64, %s66
    %p73 = scmp.eq.s32.totalorder %s14, 1
    %p74 = por %p72, %p73
    %p75 = scmp.ne.s32.totalorder %s66, %s67
    %p76 = scmp.eq.s32.totalorder %s14, 0
    %p77 = por %p75, %p76
    %p78 = scmp.ne.s32.totalorder %s66, %s67
    %p79 = scmp.eq.s32.totalorder %s15, 1
    %p80 = por %p78, %p79
    %p82 = scmp.ne.s32.totalorder %s67, %s81
    %p83 = scmp.eq.s32.totalorder %s15, 0
    %p84 = por %p82, %p83
    %s85 = ssub.s32 %s9, %s16
    %p86 = scmp.eq.s32.totalorder %s85, 0
    %s88 = sadd.s32 %s87, 1
    %s89 = scalar_select %p86, %s87, %s88
    %p92 = pneg %p86
    %p93 = scmp.eq.s32.totalorder %s9, 1
    %p94 = por %p92, %p93
    %p95 = scmp.ne.s32.totalorder %s87, %s90
    %p96 = scmp.eq.s32.totalorder %s9, 0
    %p97 = por %p95, %p96
    %p98 = scmp.ne.s32.totalorder %s87, %s90
    %p99 = scmp.eq.s32.totalorder %s14, 1
    %p100 = por %p98, %p99
    %p101 = scmp.ne.s32.totalorder %s90, %s91
    %p102 = scmp.eq.s32.totalorder %s14, 0
    %p103 = por %p101, %p102
    %p104 = scmp.ne.s32.totalorder %s90, %s91
    %p105 = scmp.eq.s32.totalorder %s15, 1
    %p106 = por %p104, %p105
    %p108 = scmp.ne.s32.totalorder %s91, %s107
    %p109 = scmp.eq.s32.totalorder %s15, 0
    %p110 = por %p108, %p109
    %p111 = scmp.le.s32.totalorder 1, %s9
    %p112 = scmp.lt.s32.totalorder %s9, 3
    %p113 = pnand %p111, %p112
    %p114 = pneg %p113
    // Predicated region
    $region9: #{se_block_scale_nchw.1} parent=5 // pred_check
      _
    $region10: #{se_block_scale_nchw.1} parent=5 // pred_check_branch
      %116 = sbr.rel (%p113) target = $region12
    $region11: #{se_block_scale_nchw.1} parent=5 // pred_region
      %s117 = ssub.s32 %s9, 1
      // Predicated region
      $region13: #{se_block_scale_nchw.1} parent=11 // pred_check
        %p118 = pneg %p56
      $region14: #{se_block_scale_nchw.1} parent=11 // pred_check_branch
        %120 = sbr.rel (%p118) target = $region16
      $region15: #{se_block_scale_nchw.1} parent=11 // pred_region
        _
      $region16: #{se_block_scale_nchw.1} parent=11 // pred_fallthru
        _
      // Predicated region
      $region17: #{se_block_scale_nchw.1} parent=11 // pred_check
        %p121 = pneg %p77
      $region18: #{se_block_scale_nchw.1} parent=11 // pred_check_branch
        %123 = sbr.rel (%p121) target = $region20
      $region19: #{se_block_scale_nchw.1} parent=11 // pred_region
        _
      $region20: #{se_block_scale_nchw.1} parent=11 // pred_fallthru
        _
    $region12: #{se_block_scale_nchw.1} parent=5 // pred_fallthru
      _
    %p124 = scmp.lt.s32.totalorder %s9, 2
    // Predicated region
    $region21: #{se_block_scale_nchw.1} parent=5 // pred_check
      %p125 = pneg %p124
    $region22: #{se_block_scale_nchw.1} parent=5 // pred_check_branch
      %127 = sbr.rel (%p125) target = $region24
    $region23: #{se_block_scale_nchw.1} parent=5 // pred_region
      // Predicated region
      $region25: #{se_block_scale_nchw.1} parent=23 // pred_check
        %p128 = pneg %p29
      $region26: #{se_block_scale_nchw.1} parent=23 // pred_check_branch
        %130 = sbr.rel (%p128) target = $region28
      $region27: #{se_block_scale_nchw.1} parent=23 // pred_region
        %s131 = smul.u32 2, %s9
        %p132 = scmp.lt.s32.totalorder %s131, 3
        %s133 = scalar_select %p132, %s131, 3
        %s134 = smul.addr %s133, 4
        %s135 = smul.addr %s134, 8
        %s136 = scalar_lea.vmem %s0, %s135
        %s137 = smul.u32 2, %s9
      $region28: #{se_block_scale_nchw.1} parent=23 // pred_fallthru
        _
    $region24: #{se_block_scale_nchw.1} parent=5 // pred_fallthru
      _
    %p138 = scmp.le.s32.totalorder 1, %s9
    %p139 = scmp.lt.s32.totalorder %s9, 3
    %p140 = pnand %p138, %p139
    %p141 = pneg %p140
    // Predicated region
    $region29: #{se_block_scale_nchw.1} parent=5 // pred_check
      _
    $region30: #{se_block_scale_nchw.1} parent=5 // pred_check_branch
      %143 = sbr.rel (%p140) target = $region32
    $region31: #{se_block_scale_nchw.1} parent=5 // pred_region
      %s144 = ssub.s32 %s9, 1
      %s145 = smul.u32 2, %s14
      %p146 = scmp.lt.s32.totalorder %s145, 3
      %s147 = scalar_select %p146, %s145, 3
      %s148 = smul.addr %s147, 4
      %s149 = smul.addr %s148, 8
      %s150 = scalar_lea.vmem %s0, %s149
      %p151 = pneg %p35
      %p152 = pneg %p32
      %p153 = pneg %p56
      %p154 = pneg %p53
      %p155 = pneg %p77
      %p156 = pneg %p74
      %p157 = pneg %p103
      %p158 = pneg %p100
      %s159 = smul.u32 2, %s14
      %p160 = scmp.lt.s32.totalorder %s159, 3
      %s161 = scalar_select %p160, %s159, 3
      %s162 = smul.addr %s161, 4
      %s163 = smul.addr %s162, 8
      %s164 = scalar_lea.vmem %s3, %s163
      %s165 = smul.u32 2, %s14
      %p166 = scmp.lt.s32.totalorder %s165, 3
      %s167 = scalar_select %p166, %s165, 3
      %s168 = smul.addr %s167, 4
      %s169 = smul.addr %s168, 8
      %s170 = scalar_lea.vmem %s0, %s169
      %s171 = smul.u32 2, %s14
      %s172 = smul.u32 2, %s14
      %p173 = scmp.lt.s32.totalorder %s172, 3
      %s174 = scalar_select %p173, %s172, 3
      %s175 = smul.addr %s174, 4
      %s176 = smul.addr %s175, 8
      %s177 = scalar_lea.vmem %s3, %s176
      %s178 = smul.u32 2, %s14
      %v179 = vld [vmem:[%s170] sm:$0xff]
      %v180 = vld [vmem:[%s170 + $0x8] sm:$0xff]
      %v181 = vld [vmem:[%s170 + $0x10] sm:$0xff]
      %v182 = vld [vmem:[%s170 + $0x18] sm:$0xff]
      %v183 = vld [vmem:[%s170 + $0x20] sm:$0xff]
      %v184 = vld [vmem:[%s170 + $0x28] sm:$0xff]
      %v185 = vld [vmem:[%s170 + $0x30] sm:$0xff]
      %v186 = vld [vmem:[%s170 + $0x38] sm:$0xff]
      %v187 = vadd.f32 %v179, %v180
      %v188 = vadd.f32 %v187, %v181
      %v189 = vadd.f32 %v188, %v182
      %v190 = vrot.slane %v189, 4
      %v191 = vadd.f32 %v189, %v190
      %v192 = vrot.slane %v191, 2
      %v193 = vadd.f32 %v191, %v192
      %v194 = vrot.slane %v193, 1
      %v195 = vadd.f32 %v193, %v194
      %v196 = vadd.f32 %v183, %v184
      %v197 = vadd.f32 %v196, %v185
      %v198 = vadd.f32 %v197, %v186
      %v199 = vrot.slane %v198, 4
      %v200 = vadd.f32 %v198, %v199
      %v201 = vrot.slane %v200, 2
      %v202 = vadd.f32 %v200, %v201
      %v203 = vrot.slane %v202, 1
      %v204 = vadd.f32 %v202, %v203
      %v205 = vrcp.pop 32.0
      %v206 = vmul.f32 32.0, %v205
      %v207 = vsub.f32 1.0, %v206
      %v208 = vmul.f32 %v205, %v207
      %v209 = vadd.f32 %v205, %v208
      %vm210 = vweird.f32 %v205
      %v211 = vsel %vm210, %v205, %v209
      %v212 = vmul.f32 %v195, %v211
      %v213 = vmul.f32 %v204, %v211
      %v214 = vld [vmem:[%s1] sm:$0xff]
      %v215 = vld [vmem:[%s1 + $0x8] sm:$0xff]
      %v216 = vld [vmem:[%s1 + $0x10] sm:$0xff]
      %v217 = vld [vmem:[%s1 + $0x18] sm:$0xff]
      %v218 = vld [vmem:[%s1 + $0x20] sm:$0xff]
      %v219 = vld [vmem:[%s1 + $0x28] sm:$0xff]
      %v220 = vld [vmem:[%s1 + $0x30] sm:$0xff]
      %v221 = vld [vmem:[%s1 + $0x38] sm:$0xff]
      %v222 = vld [vmem:[%s1 + $0x40] sm:$0xff]
      %v223 = vld [vmem:[%s1 + $0x48] sm:$0xff]
      %v224 = vld [vmem:[%s1 + $0x50] sm:$0xff]
      %v225 = vld [vmem:[%s1 + $0x58] sm:$0xff]
      %v226 = vld [vmem:[%s1 + $0x60] sm:$0xff]
      %v227 = vld [vmem:[%s1 + $0x68] sm:$0xff]
      %v228 = vld [vmem:[%s1 + $0x70] sm:$0xff]
      %v229 = vld [vmem:[%s1 + $0x78] sm:$0xff]
      %v230 = vld [vmem:[%s2] sm:$0xf]
      %vm233 = vcmask 1041409
      %v234 = vsel %vm233, %v213, %v212
      %236 = vmatpush.msra.mxu0 %v229
      %237 = vmatpush.msra.mxu0 %v228
      %238 = vmatpush.msra.mxu0 %v227
      %239 = vmatpush.msra.mxu0 %v226
      %240 = vmatpush.msra.mxu0 %v225
      %241 = vmatpush.msra.mxu0 %v224
      %242 = vmatpush.msra.mxu0 %v223
      %243 = vmatpush.msra.mxu0 %v222
      %244 = vmatpush.msra.mxu0 %v221
      %245 = vmatpush.msra.mxu0 %v220
      %246 = vmatpush.msra.mxu0 %v219
      %247 = vmatpush.msra.mxu0 %v218
      %248 = vmatpush.msra.mxu0 %v217
      %249 = vmatpush.msra.mxu0 %v216
      %250 = vmatpush.msra.mxu0 %v215
      %251 = vmatpush.msra.mxu0 %v214
      %252 = vmatmul.f32.gmra.mxu0 %v234
      %v253 = vpop.f32.mrf.mxu0
      %v254 = vadd.f32 0.0, %v253
      %255 = vdwg.mxu0
      %v256 = vmax.f32 %v254, 0.0
      %vm257 = vcmask 31744
      %v259 = vsel %vm257, %v256, 0
      %vm261 = vcmask 1043456
      %v263 = vsel %vm261, %v230, 0
      %265 = vmatpush.msra.mxu0 0.0
      %266 = vmatpush.msra.mxu0 0.0
      %267 = vmatpush.msra.mxu0 0.0
      %268 = vmatpush.msra.mxu0 0.0
      %269 = vmatpush.msra.mxu0 0.0
      %270 = vmatpush.msra.mxu0 0.0
      %271 = vmatpush.msra.mxu0 0.0
      %272 = vmatpush.msra.mxu0 0.0
      %273 = vmatpush.msra.mxu0 0.0
      %274 = vmatpush.msra.mxu0 0.0
      %275 = vmatpush.msra.mxu0 0.0
      %276 = vmatpush.msra.mxu0 0.0
      %277 = vmatpush.msra.mxu0 0.0
      %278 = vmatpush.msra.mxu0 0.0
      %279 = vmatpush.msra.mxu0 0.0
      %280 = vmatpush.msra.mxu0 %v263
      %281 = vmatmul.f32.gmra.mxu0 %v259
      %v282 = vpop.f32.mrf.mxu0
      %v283 = vadd.f32 0.0, %v282
      %284 = vdwg.mxu0
      %v285 = vxor.u32 %v283, 2147483648
      %v286 = vmul.f32 %v285, 1.442695
      %v287 = vpow.pop %v286
      %v288 = vadd.f32 %v287, 1.0
      %v289 = vrcp.pop %v288
      %v290 = vmul.f32 %v288, %v289
      %v291 = vsub.f32 1.0, %v290
      %v292 = vmul.f32 %v289, %v291
      %v293 = vadd.f32 %v289, %v292
      %vm294 = vweird.f32 %v288
      %vm295 = vweird.f32 %v289
      %vm296 = vmor %vm294, %vm295
      %v297 = vsel %vm296, %v289, %v293
      %v298 = vand.u32 2147483647, %v288
      %vm299 = vcmp.eq.f32.partialorder %v298, 8.507059e+37
      %v300 = vand.u32 %v288, 2147483648
      %v301 = vor.u32 1.1754944e-38, %v300
      %v302 = vsel %vm299, %v301, %v297
      %v303 = vmul.f32 1.0, %v302
      %v305 = vrot.slane %v303, 1
      %v306 = vperm.slane %v303, 0
      %v307 = vperm.slane %v305, 0
      %v310 = vmul.f32 %v179, %v306
      %v311 = vmul.f32 %v180, %v306
      %v312 = vmul.f32 %v181, %v306
      %v313 = vmul.f32 %v182, %v306
      %v314 = vmul.f32 %v183, %v307
      %v315 = vmul.f32 %v184, %v307
      %v316 = vmul.f32 %v185, %v307
      %v317 = vmul.f32 %v186, %v307
      %318 = vst [vmem:[%s177] sm:$0xff] %v310
      %319 = vst [vmem:[%s177 + $0x8] sm:$0xff] %v311
      %320 = vst [vmem:[%s177 + $0x10] sm:$0xff] %v312
      %321 = vst [vmem:[%s177 + $0x18] sm:$0xff] %v313
      %322 = vst [vmem:[%s177 + $0x20] sm:$0xff] %v314
      %323 = vst [vmem:[%s177 + $0x28] sm:$0xff] %v315
      %324 = vst [vmem:[%s177 + $0x30] sm:$0xff] %v316
      %325 = vst [vmem:[%s177 + $0x38] sm:$0xff] %v317
      %s326 = smul.u32 2, %s14
      %p327 = scmp.lt.s32.totalorder %s326, 3
      %s328 = scalar_select %p327, %s326, 3
      %s329 = smul.addr %s328, 4
      %s330 = smul.addr %s329, 8
      %s331 = scalar_lea.vmem %s3, %s330
      // Predicated region
      $region33: #{se_block_scale_nchw.1} parent=31 // pred_check
        %p332 = pneg %p100
      $region34: #{se_block_scale_nchw.1} parent=31 // pred_check_branch
        %334 = sbr.rel (%p332) target = $region36
      $region35: #{se_block_scale_nchw.1} parent=31 // pred_region
        %s335 = smul.u32 2, %s14
      $region36: #{se_block_scale_nchw.1} parent=31 // pred_fallthru
        _
    $region32: #{se_block_scale_nchw.1} parent=5 // pred_fallthru
      _
    %p336 = scmp.le.s32.totalorder 2, %s9
    // Predicated region
    $region37: #{se_block_scale_nchw.1} parent=5 // pred_check
      %p337 = pneg %p336
    $region38: #{se_block_scale_nchw.1} parent=5 // pred_check_branch
      %339 = sbr.rel (%p337) target = $region40
    $region39: #{se_block_scale_nchw.1} parent=5 // pred_region
      %s340 = ssub.s32 %s9, 2
      // Predicated region
      $region41: #{se_block_scale_nchw.1} parent=39 // pred_check
        %p341 = pneg %p106
      $region42: #{se_block_scale_nchw.1} parent=39 // pred_check_branch
        %343 = sbr.rel (%p341) target = $region44
      $region43: #{se_block_scale_nchw.1} parent=39 // pred_region
        %s344 = smul.u32 2, %s15
        %p345 = scmp.lt.s32.totalorder %s344, 3
        %s346 = scalar_select %p345, %s344, 3
        %s347 = smul.addr %s346, 4
        %s348 = smul.addr %s347, 8
        %s349 = scalar_lea.vmem %s3, %s348
      $region44: #{se_block_scale_nchw.1} parent=39 // pred_fallthru
        _
    $region40: #{se_block_scale_nchw.1} parent=5 // pred_fallthru
      _
  $region6: #{se_block_scale_nchw.1} parent=0 // loop_footer
    %s13 = sadd.s32 1, %s9
  $region7: #{se_block_scale_nchw.1} parent=0 // loop_footer_branch
    %8 = sbr.rel target = $region3
  $region8: #{se_block_scale_nchw.1} parent=0 // loop_exit
    _

</llo_original>
